<compile_context>
chip_gen: v6e
topology: v6e:2x2x1
jax: 0.10.0
libtpu: 0.0.40
codegen_flags: <defaults>
</compile_context>

<pallas_src>
import functools

import jax
import jax.numpy as jnp
from jax.experimental import pallas as pl
from jax.experimental.pallas import tpu as pltpu


def _round_up(x, m):
    return (x + m - 1) // m * m


def _gmdn_kernel(x_ref, w_ref, w_out_ref, m_out_ref, lv_out_ref):
    GE = m_out_ref.shape[-1]          # num_gaussians * emb_size
    G = w_out_ref.shape[-1]           # num_gaussians

    # Single fused matmul, f32 accumulation on the MXU.
    y = jnp.dot(x_ref[...], w_ref[...],
                preferred_element_type=jnp.float32)        # (TM, 2*GE + G)

    # means: plain linear (128-aligned lane slice -> free).
    m_out_ref[...] = y[:, :GE].astype(m_out_ref.dtype)

    # "logvars": softplus(linear(x)), numerically stable form (exp/log1p land
    # on the EUP slot).
    v = y[:, GE:2 * GE]
    lv_out_ref[...] = (jnp.maximum(v, 0.0)
                       + jnp.log1p(jnp.exp(-jnp.abs(v)))).astype(lv_out_ref.dtype)

    # mixture weights: softmax over the tiny G-wide tail block.
    logits = y[:, 2 * GE:2 * GE + G]
    logits = logits - jnp.max(logits, axis=-1, keepdims=True)
    e = jnp.exp(logits)
    inv = pl.reciprocal(jnp.sum(e, axis=-1, keepdims=True), approx=True)
    w_out_ref[...] = (e * inv).astype(w_out_ref.dtype)


@functools.partial(jax.jit,
                   static_argnames=("tile_m", "compute_dtype", "out_dtype"))
def gmdn_forward(x, w_weights, w_means, w_vars, *, tile_m=1024,
                 compute_dtype=jnp.float32, out_dtype=jnp.float32):
    """x: (B, P, E); w_*: PyTorch-style Linear weights (out_features, E)."""
    B, P, E = x.shape
    G = w_weights.shape[0]
    GE = w_means.shape[0]
    assert GE == G * E and w_vars.shape[0] == GE
    M = B * P

    # Fused weight slab: [means | logvars | weight-logits] along the output
    # axis so the two wide outputs slice out at 128-aligned lane offsets.
    w_fused = jnp.concatenate(
        [w_means.T, w_vars.T, w_weights.T], axis=1).astype(compute_dtype)
    N_fused = 2 * GE + G

    # Row tiling: big tile to amortize per-step overhead, padded so any B*P
    # works (padded rows compute garbage that is sliced off below).
    tile = min(tile_m, _round_up(M, 8))
    M_pad = _round_up(M, tile)
    x2 = x.reshape(M, E).astype(compute_dtype)
    if M_pad != M:
        x2 = jnp.pad(x2, ((0, M_pad - M), (0, 0)))

    grid = (M_pad // tile,)
    w, m, lv = pl.pallas_call(
        _gmdn_kernel,
        out_shape=(
            jax.ShapeDtypeStruct((M_pad, G), out_dtype),
            jax.ShapeDtypeStruct((M_pad, GE), out_dtype),
            jax.ShapeDtypeStruct((M_pad, GE), out_dtype),
        ),
        grid_spec=pltpu.PrefetchScalarGridSpec(
            num_scalar_prefetch=0,
            grid=grid,
            in_specs=[
                pl.BlockSpec((tile, E), lambda i: (i, 0)),
                pl.BlockSpec((E, N_fused), lambda i: (0, 0)),
            ],
            out_specs=(
                pl.BlockSpec((tile, G), lambda i: (i, 0)),
                pl.BlockSpec((tile, GE), lambda i: (i, 0)),
                pl.BlockSpec((tile, GE), lambda i: (i, 0)),
            ),
        ),
        compiler_params=pltpu.CompilerParams(
            dimension_semantics=("parallel",),
            vmem_limit_bytes=32 * 1024 * 1024,
        ),
    )(x2, w_fused)

    weights = w[:M].reshape(B, P, G)
    means = m[:M].reshape(B, P, E, G)       # out feature index = e*G + g, as in
    logvars = lv[:M].reshape(B, P, E, G)    # PyTorch .view(B, P, E, G)
    return weights, means, logvars


def _reference(x, w_weights, w_means, w_vars):
    B, P, E = x.shape
    G = w_weights.shape[0]
    weights = jax.nn.softmax(x @ w_weights.T, axis=-1)
    means = (x @ w_means.T).reshape(B, P, E, G)
    logvars = jax.nn.softplus(x @ w_vars.T).reshape(B, P, E, G)
    return weights, means, logvars


# TODO(synk): GaussianMixtureDensityNetwork.loss (static helper using
# torch.distributions.Normal) is outside forward() and not implemented here.

if __name__ == "__main__":
    # small shapes consistent with the module: emb_size=32, num_gaussians=4,
    # batch=2, patches=64
    B, P, E, G = 2, 64, 32, 4

    key = jax.random.PRNGKey(0)
    kx, kw, km, kv = jax.random.split(key, 4)

    x = jax.random.normal(kx, (B, P, E), dtype=jnp.float32)
    # deterministic "nn.Linear(bias=False)" style init: U(-1/sqrt(E), 1/sqrt(E))
    bound = 1.0 / jnp.sqrt(jnp.float32(E))
    w_weights = jax.random.uniform(kw, (G, E), jnp.float32, -bound, bound)
    w_means = jax.random.uniform(km, (G * E, E), jnp.float32, -bound, bound)
    w_vars = jax.random.uniform(kv, (G * E, E), jnp.float32, -bound, bound)

    ref_w, ref_m, ref_lv = _reference(x, w_weights, w_means, w_vars)

    # ---- default f32 path (faithful to the PyTorch module) ----
    weights, means, logvars = jax.block_until_ready(
        gmdn_forward(x, w_weights, w_means, w_vars))
    assert weights.shape == (B, P, G)
    assert means.shape == (B, P, E, G)
    assert logvars.shape == (B, P, E, G)
    # weights use the approximate EUP reciprocal -> allow ~1e-3-level error
    assert jnp.allclose(weights, ref_w, atol=5e-3, rtol=5e-3)
    assert jnp.allclose(means, ref_m, atol=1e-5, rtol=1e-5)
    assert jnp.allclose(logvars, ref_lv, atol=1e-5, rtol=1e-5)

    # ---- bf16 fast path (halves input DMA and output HBM writes) ----
    wb, mb, lvb = jax.block_until_ready(
        gmdn_forward(x, w_weights, w_means, w_vars,
                     compute_dtype=jnp.bfloat16, out_dtype=jnp.bfloat16))
    assert jnp.allclose(wb.astype(jnp.float32), ref_w, atol=5e-2, rtol=5e-2)
    assert jnp.allclose(mb.astype(jnp.float32), ref_m, atol=5e-2, rtol=5e-2)
    assert jnp.allclose(lvb.astype(jnp.float32), ref_lv, atol=5e-2, rtol=5e-2)

    print("KERNEL_OK")
</pallas_src>

<mosaic_0001>
module attributes {stable_mosaic.version = 11 : i64} {
  func.func @_gmdn_kernel(%arg0: i32, %arg1: memref<128x32xf32, #tpu.memory_space<vmem>>, %arg2: memref<32x260xf32, #tpu.memory_space<vmem>>, %arg3: memref<128x4xf32, #tpu.memory_space<vmem>>, %arg4: memref<128x128xf32, #tpu.memory_space<vmem>>, %arg5: memref<128x128xf32, #tpu.memory_space<vmem>>) attributes {dimension_semantics = [#tpu.dimension_semantics<parallel>], iteration_bounds = array<i64: 1>, scalar_prefetch = 0 : i64, scratch_operands = 0 : i64, tpu.core_type = #tpu.core_type<tc>, window_params = [{transform_indices = @transform_0, window_bounds = array<i64: 128, 32>}, {pipeline_mode = #tpu.pipeline_mode<synchronous>, transform_indices = @transform_1, window_bounds = array<i64: 32, 260>}, {transform_indices = @transform_2, window_bounds = array<i64: 128, 4>}, {transform_indices = @transform_3, window_bounds = array<i64: 128, 128>}, {transform_indices = @transform_4, window_bounds = array<i64: 128, 128>}]} {
    %c0 = arith.constant 0 : index
    %c0_0 = arith.constant 0 : index
    %0 = vector.load %arg1[%c0, %c0_0] : memref<128x32xf32, #tpu.memory_space<vmem>>, vector<128x32xf32>
    %c0_1 = arith.constant 0 : index
    %c0_2 = arith.constant 0 : index
    %1 = vector.load %arg2[%c0_1, %c0_2] : memref<32x260xf32, #tpu.memory_space<vmem>>, vector<32x260xf32>
    %cst = arith.constant dense<0.000000e+00> : vector<128x260xf32>
    %2 = tpu.matmul %0, %1, %cst {dimension_numbers = #tpu.dot_dimension_numbers<[1], [0], [0], [1], [0, 0, 1, 1], [], []>} : vector<128x32xf32>, vector<32x260xf32>, vector<128x260xf32> -> vector<128x260xf32>
    %3 = vector.extract_strided_slice %2 {offsets = [0, 0], sizes = [128, 128], strides = [1, 1]} : vector<128x260xf32> to vector<128x128xf32>
    %c0_3 = arith.constant 0 : index
    %c0_4 = arith.constant 0 : index
    %4 = vector.load %arg4[%c0_3, %c0_4] : memref<128x128xf32, #tpu.memory_space<vmem>>, vector<128x128xf32>
    tpu.vector_store %arg4[%c0_3, %c0_4], %3 {strides = array<i32>} : memref<128x128xf32, #tpu.memory_space<vmem>>, vector<128x128xf32>,
    %5 = vector.extract_strided_slice %2 {offsets = [0, 128], sizes = [128, 128], strides = [1, 1]} : vector<128x260xf32> to vector<128x128xf32>
    %cst_5 = arith.constant 0.000000e+00 : f32
    %6 = vector.broadcast %cst_5 : f32 to vector<128x128xf32>
    %7 = arith.maximumf %5, %6 : vector<128x128xf32>
    %8 = math.absf %5 : vector<128x128xf32>
    %cst_6 = arith.constant 0.000000e+00 : f32
    %9 = vector.broadcast %cst_6 : f32 to vector<128x128xf32>
    %10 = arith.subf %9, %8 : vector<128x128xf32>
    %11 = math.exp %10 : vector<128x128xf32>
    %12 = math.log1p %11 : vector<128x128xf32>
    %13 = arith.addf %7, %12 : vector<128x128xf32>
    %c0_7 = arith.constant 0 : index
    %c0_8 = arith.constant 0 : index
    %14 = vector.load %arg5[%c0_7, %c0_8] : memref<128x128xf32, #tpu.memory_space<vmem>>, vector<128x128xf32>
    tpu.vector_store %arg5[%c0_7, %c0_8], %13 {strides = array<i32>} : memref<128x128xf32, #tpu.memory_space<vmem>>, vector<128x128xf32>,
    %15 = vector.extract_strided_slice %2 {offsets = [0, 256], sizes = [128, 4], strides = [1, 1]} : vector<128x260xf32> to vector<128x4xf32>
    %cst_9 = arith.constant dense<0xFF800000> : vector<128xf32>
    %16 = vector.multi_reduction <maximumf>, %15, %cst_9 [1] : vector<128x4xf32> to vector<128xf32>
    %17 = vector.shape_cast %16 : vector<128xf32> to vector<128x1xf32>
    %18 = vector.broadcast %17 : vector<128x1xf32> to vector<128x4xf32>
    %19 = arith.subf %15, %18 : vector<128x4xf32>
    %20 = math.exp %19 : vector<128x4xf32>
    %cst_10 = arith.constant dense<0.000000e+00> : vector<128xf32>
    %21 = vector.multi_reduction <add>, %20, %cst_10 [1] : vector<128x4xf32> to vector<128xf32>
    %22 = vector.shape_cast %21 : vector<128xf32> to vector<128x1xf32>
    %23 = tpu.reciprocal %22 {approx = true} : vector<128x1xf32> -> vector<128x1xf32>
    %24 = vector.broadcast %23 : vector<128x1xf32> to vector<128x4xf32>
    %25 = arith.mulf %20, %24 : vector<128x4xf32>
    %c0_11 = arith.constant 0 : index
    %c0_12 = arith.constant 0 : index
    %26 = vector.load %arg3[%c0_11, %c0_12] : memref<128x4xf32, #tpu.memory_space<vmem>>, vector<128x4xf32>
    tpu.vector_store %arg3[%c0_11, %c0_12], %25 {strides = array<i32>} : memref<128x4xf32, #tpu.memory_space<vmem>>, vector<128x4xf32>,
    return
  }
  func.func @transform_0(%arg0: i32) -> (i32, i32) {
    %c0_i32 = arith.constant 0 : i32
    %c0_i32_0 = arith.constant 0 : i32
    return %arg0, %c0_i32 : i32, i32
  }
  func.func @transform_1(%arg0: i32) -> (i32, i32) {
    %c0_i32 = arith.constant 0 : i32
    %c0_i32_0 = arith.constant 0 : i32
    %c0_i32_1 = arith.constant 0 : i32
    return %c0_i32, %c0_i32_0 : i32, i32
  }
  func.func @transform_2(%arg0: i32) -> (i32, i32) {
    %c0_i32 = arith.constant 0 : i32
    %c0_i32_0 = arith.constant 0 : i32
    return %arg0, %c0_i32 : i32, i32
  }
  func.func @transform_3(%arg0: i32) -> (i32, i32) {
    %c0_i32 = arith.constant 0 : i32
    %c0_i32_0 = arith.constant 0 : i32
    return %arg0, %c0_i32 : i32, i32
  }
  func.func @transform_4(%arg0: i32) -> (i32, i32) {
    %c0_i32 = arith.constant 0 : i32
    %c0_i32_0 = arith.constant 0 : i32
    return %arg0, %c0_i32 : i32, i32
  }
}

</mosaic_0001>

<llo_original>
// kernel: gmdn_forward.1
$region0: #{gmdn_forward.1}
  #allocation0 [shape = 'u32[]', space=smem, size = 0x4, offset = 0x4, fixed_abs, tag = 'smem constant byte address 0x4 - core index']
  #allocation1 [shape = 'u32[144,128]{1,0:T(1,128)}', space=vmem, size = 0x12000, scoped, tag = 'internal scratch']
  %s0 = inlined_call_operand.vmem [shape: f32[128,32], index: 0, kind: input, shape index: {}]
  %s1 = inlined_call_operand.vmem [shape: f32[32,260], index: 1, kind: input, shape index: {}]
  %s2 = inlined_call_operand.vmem [shape: f32[128,4], index: 2, kind: output, shape index: {0}]
  %s3 = inlined_call_operand.vmem [shape: f32[128,128], index: 3, kind: output, shape index: {1}]
  %s4 = inlined_call_operand.vmem [shape: f32[128,128], index: 4, kind: output, shape index: {2}]
  %5 = xla_tuple %s2, %s3, %s4
  %s6 = sld [smem:[#allocation0]]
  $region34: #{gmdn_forward.1} parent=0
    _
  %s8 = ssub.s32 1, %s6
  %s9 = scalar_select 0, %s8, %s6
  // Predicated region
  $region2: #{gmdn_forward.1} parent=0 // pred_check
    _
  $region3: #{gmdn_forward.1} parent=0 // pred_check_branch
    %11 = sbr.rel (0) target = $region5
  $region4: #{gmdn_forward.1} parent=0 // pred_region
    _
  $region5: #{gmdn_forward.1} parent=0 // pred_fallthru
    _
  // Predicated region
  $region6: #{gmdn_forward.1} parent=0 // pred_check
    _
  $region7: #{gmdn_forward.1} parent=0 // pred_check_branch
    %13 = sbr.rel (0) target = $region9
  $region8: #{gmdn_forward.1} parent=0 // pred_region
    _
  $region9: #{gmdn_forward.1} parent=0 // pred_fallthru
    _
  %v14 = vld [vmem:[%s0] sm:$0xff]
  %v15 = vld [vmem:[%s0 + $0x8] sm:$0xff]
  %v16 = vld [vmem:[%s0 + $0x10] sm:$0xff]
  %v17 = vld [vmem:[%s0 + $0x18] sm:$0xff]
  %v18 = vld [vmem:[%s0 + $0x20] sm:$0xff]
  %v19 = vld [vmem:[%s0 + $0x28] sm:$0xff]
  %v20 = vld [vmem:[%s0 + $0x30] sm:$0xff]
  %v21 = vld [vmem:[%s0 + $0x38] sm:$0xff]
  %v22 = vld [vmem:[%s0 + $0x40] sm:$0xff]
  %v23 = vld [vmem:[%s0 + $0x48] sm:$0xff]
  %v24 = vld [vmem:[%s0 + $0x50] sm:$0xff]
  %v25 = vld [vmem:[%s0 + $0x58] sm:$0xff]
  %v26 = vld [vmem:[%s0 + $0x60] sm:$0xff]
  %v27 = vld [vmem:[%s0 + $0x68] sm:$0xff]
  %v28 = vld [vmem:[%s0 + $0x70] sm:$0xff]
  %v29 = vld [vmem:[%s0 + $0x78] sm:$0xff]
  %v30 = vld [vmem:[%s1] sm:$0xff]
  %v31 = vld [vmem:[%s1 + $0x8] sm:$0xff]
  %v32 = vld [vmem:[%s1 + $0x10] sm:$0xff]
  %v33 = vld [vmem:[%s1 + $0x18] sm:$0xff]
  %v34 = vld [vmem:[%s1 + $0x20] sm:$0xff]
  %v35 = vld [vmem:[%s1 + $0x28] sm:$0xff]
  %v36 = vld [vmem:[%s1 + $0x30] sm:$0xff]
  %v37 = vld [vmem:[%s1 + $0x38] sm:$0xff]
  %v38 = vld [vmem:[%s1 + $0x40] sm:$0xff]
  %v39 = vld [vmem:[%s1 + $0x48] sm:$0xff]
  %v40 = vld [vmem:[%s1 + $0x50] sm:$0xff]
  %v41 = vld [vmem:[%s1 + $0x58] sm:$0xff]
  %vm42 = vcmask 261120
  %v44 = vsel %vm42, %v14, 0
  %v47 = vsel %vm42, %v15, 0
  %v50 = vsel %vm42, %v16, 0
  %v53 = vsel %vm42, %v17, 0
  %v56 = vsel %vm42, %v18, 0
  %v59 = vsel %vm42, %v19, 0
  %v62 = vsel %vm42, %v20, 0
  %v65 = vsel %vm42, %v21, 0
  %v68 = vsel %vm42, %v22, 0
  %v71 = vsel %vm42, %v23, 0
  %v74 = vsel %vm42, %v24, 0
  %v77 = vsel %vm42, %v25, 0
  %v80 = vsel %vm42, %v26, 0
  %v83 = vsel %vm42, %v27, 0
  %v86 = vsel %vm42, %v28, 0
  %v89 = vsel %vm42, %v29, 0
  %91 = vmatprep.subr.mxu0 0.0
  %92 = vmatpush1.msra.mxu0 0.0
  %93 = vmatprep.subr.mxu0 0.0
  %94 = vmatpush1.msra.mxu0 0.0
  %95 = vmatprep.subr.mxu0 0.0
  %96 = vmatpush1.msra.mxu0 0.0
  %97 = vmatprep.subr.mxu0 0.0
  %98 = vmatpush1.msra.mxu0 0.0
  %99 = vmatprep.subr.mxu0 0.0
  %100 = vmatpush1.msra.mxu0 0.0
  %101 = vmatprep.subr.mxu0 0.0
  %102 = vmatpush1.msra.mxu0 0.0
  %103 = vmatprep.subr.mxu0 0.0
  %104 = vmatpush1.msra.mxu0 0.0
  %105 = vmatprep.subr.mxu0 0.0
  %106 = vmatpush1.msra.mxu0 0.0
  %107 = vmatprep.subr.mxu0 0.0
  %108 = vmatpush1.msra.mxu0 0.0
  %109 = vmatprep.subr.mxu0 0.0
  %110 = vmatpush1.msra.mxu0 0.0
  %111 = vmatprep.subr.mxu0 0.0
  %112 = vmatpush1.msra.mxu0 0.0
  %113 = vmatprep.subr.mxu0 0.0
  %114 = vmatpush1.msra.mxu0 0.0
  %115 = vmatprep.subr.mxu0 %v40
  %116 = vmatpush1.msra.mxu0 %v39
  %117 = vmatprep.subr.mxu0 %v37
  %118 = vmatpush1.msra.mxu0 %v36
  %119 = vmatprep.subr.mxu0 %v34
  %120 = vmatpush1.msra.mxu0 %v33
  %121 = vmatprep.subr.mxu0 %v31
  %122 = vmatpush1.msra.mxu0 %v30
  %123 = vmatprep.subr.mxu0 0.0
  %124 = vmatpush2.msra.mxu0 0.0
  %125 = vmatprep.subr.mxu0 0.0
  %126 = vmatpush2.msra.mxu0 0.0
  %127 = vmatprep.subr.mxu0 0.0
  %128 = vmatpush2.msra.mxu0 0.0
  %129 = vmatprep.subr.mxu0 0.0
  %130 = vmatpush2.msra.mxu0 0.0
  %131 = vmatprep.subr.mxu0 0.0
  %132 = vmatpush2.msra.mxu0 0.0
  %133 = vmatprep.subr.mxu0 0.0
  %134 = vmatpush2.msra.mxu0 0.0
  %135 = vmatprep.subr.mxu0 0.0
  %136 = vmatpush2.msra.mxu0 0.0
  %137 = vmatprep.subr.mxu0 0.0
  %138 = vmatpush2.msra.mxu0 0.0
  %139 = vmatprep.subr.mxu0 0.0
  %140 = vmatpush2.msra.mxu0 0.0
  %141 = vmatprep.subr.mxu0 0.0
  %142 = vmatpush2.msra.mxu0 0.0
  %143 = vmatprep.subr.mxu0 0.0
  %144 = vmatpush2.msra.mxu0 0.0
  %145 = vmatprep.subr.mxu0 0.0
  %146 = vmatpush2.msra.mxu0 0.0
  %147 = vmatprep.subr.mxu0 0.0
  %148 = vmatpush2.msra.mxu0 0.0
  %149 = vmatprep.subr.mxu0 0.0
  %150 = vmatpush2.msra.mxu0 0.0
  %151 = vmatprep.subr.mxu0 0.0
  %152 = vmatpush2.msra.mxu0 0.0
  %153 = vmatprep.subr.mxu0 0.0
  %154 = vmatpush2.msra.mxu0 0.0
  %155 = vmatprep.mubr.f32.mxu0 0.0
  %156 = vmatmul.mubr.f32.gmra.mxu0 %v44
  %v157 = vpop.f32.mrf.mxu0
  %v158 = vadd.f32 0.0, %v157
  %v159 = vpop.f32.mrf.mxu0
  %v160 = vadd.f32 0.0, %v159
  %161 = vmatprep.mubr.f32.mxu0 0.0
  %162 = vmatmul.mubr.f32.gmra.mxu0 %v47
  %v163 = vpop.f32.mrf.mxu0
  %v164 = vadd.f32 0.0, %v163
  %v165 = vpop.f32.mrf.mxu0
  %v166 = vadd.f32 0.0, %v165
  %167 = vmatprep.mubr.f32.mxu0 0.0
  %168 = vmatmul.mubr.f32.gmra.mxu0 %v50
  %v169 = vpop.f32.mrf.mxu0
  %v170 = vadd.f32 0.0, %v169
  %v171 = vpop.f32.mrf.mxu0
  %v172 = vadd.f32 0.0, %v171
  %173 = vmatprep.mubr.f32.mxu0 0.0
  %174 = vmatmul.mubr.f32.gmra.mxu0 %v53
  %v175 = vpop.f32.mrf.mxu0
  %v176 = vadd.f32 0.0, %v175
  %v177 = vpop.f32.mrf.mxu0
  %v178 = vadd.f32 0.0, %v177
  %179 = vmatprep.mubr.f32.mxu0 0.0
  %180 = vmatmul.mubr.f32.gmra.mxu0 %v56
  %v181 = vpop.f32.mrf.mxu0
  %v182 = vadd.f32 0.0, %v181
  %v183 = vpop.f32.mrf.mxu0
  %v184 = vadd.f32 0.0, %v183
  %185 = vmatprep.mubr.f32.mxu0 0.0
  %186 = vmatmul.mubr.f32.gmra.mxu0 %v59
  %v187 = vpop.f32.mrf.mxu0
  %v188 = vadd.f32 0.0, %v187
  %v189 = vpop.f32.mrf.mxu0
  %v190 = vadd.f32 0.0, %v189
  %191 = vmatprep.mubr.f32.mxu0 0.0
  %192 = vmatmul.mubr.f32.gmra.mxu0 %v62
  %v193 = vpop.f32.mrf.mxu0
  %v194 = vadd.f32 0.0, %v193
  %v195 = vpop.f32.mrf.mxu0
  %v196 = vadd.f32 0.0, %v195
  %197 = vmatprep.mubr.f32.mxu0 0.0
  %198 = vmatmul.mubr.f32.gmra.mxu0 %v65
  %v199 = vpop.f32.mrf.mxu0
  %v200 = vadd.f32 0.0, %v199
  %v201 = vpop.f32.mrf.mxu0
  %v202 = vadd.f32 0.0, %v201
  %203 = vmatprep.mubr.f32.mxu0 0.0
  %204 = vmatmul.mubr.f32.gmra.mxu0 %v68
  %v205 = vpop.f32.mrf.mxu0
  %v206 = vadd.f32 0.0, %v205
  %v207 = vpop.f32.mrf.mxu0
  %v208 = vadd.f32 0.0, %v207
  %209 = vmatprep.mubr.f32.mxu0 0.0
  %210 = vmatmul.mubr.f32.gmra.mxu0 %v71
  %v211 = vpop.f32.mrf.mxu0
  %v212 = vadd.f32 0.0, %v211
  %v213 = vpop.f32.mrf.mxu0
  %v214 = vadd.f32 0.0, %v213
  %215 = vmatprep.mubr.f32.mxu0 0.0
  %216 = vmatmul.mubr.f32.gmra.mxu0 %v74
  %v217 = vpop.f32.mrf.mxu0
  %v218 = vadd.f32 0.0, %v217
  %v219 = vpop.f32.mrf.mxu0
  %v220 = vadd.f32 0.0, %v219
  %221 = vmatprep.mubr.f32.mxu0 0.0
  %222 = vmatmul.mubr.f32.gmra.mxu0 %v77
  %v223 = vpop.f32.mrf.mxu0
  %v224 = vadd.f32 0.0, %v223
  %v225 = vpop.f32.mrf.mxu0
  %v226 = vadd.f32 0.0, %v225
  %227 = vmatprep.mubr.f32.mxu0 0.0
  %228 = vmatmul.mubr.f32.gmra.mxu0 %v80
  %v229 = vpop.f32.mrf.mxu0
  %v230 = vadd.f32 0.0, %v229
  %v231 = vpop.f32.mrf.mxu0
  %v232 = vadd.f32 0.0, %v231
  %233 = vmatprep.mubr.f32.mxu0 0.0
  %234 = vmatmul.mubr.f32.gmra.mxu0 %v83
  %v235 = vpop.f32.mrf.mxu0
  %v236 = vadd.f32 0.0, %v235
  %v237 = vpop.f32.mrf.mxu0
  %v238 = vadd.f32 0.0, %v237
  %239 = vmatprep.mubr.f32.mxu0 0.0
  %240 = vmatmul.mubr.f32.gmra.mxu0 %v86
  %v241 = vpop.f32.mrf.mxu0
  %v242 = vadd.f32 0.0, %v241
  %v243 = vpop.f32.mrf.mxu0
  %v244 = vadd.f32 0.0, %v243
  %245 = vmatprep.mubr.f32.mxu0 0.0
  %246 = vmatmul.mubr.f32.gmra.mxu0 %v89
  %v247 = vpop.f32.mrf.mxu0
  %v248 = vadd.f32 0.0, %v247
  %v249 = vpop.f32.mrf.mxu0
  %v250 = vadd.f32 0.0, %v249
  %251 = vdwg.mxu0
  %252 = vmatprep.subr.mxu0 0.0
  %253 = vmatpush1.msra.mxu0 0.0
  %254 = vmatprep.subr.mxu0 0.0
  %255 = vmatpush1.msra.mxu0 0.0
  %256 = vmatprep.subr.mxu0 0.0
  %257 = vmatpush1.msra.mxu0 0.0
  %258 = vmatprep.subr.mxu0 0.0
  %259 = vmatpush1.msra.mxu0 0.0
  %260 = vmatprep.subr.mxu0 0.0
  %261 = vmatpush1.msra.mxu0 0.0
  %262 = vmatprep.subr.mxu0 0.0
  %263 = vmatpush1.msra.mxu0 0.0
  %264 = vmatprep.subr.mxu0 0.0
  %265 = vmatpush1.msra.mxu0 0.0
  %266 = vmatprep.subr.mxu0 0.0
  %267 = vmatpush1.msra.mxu0 0.0
  %268 = vmatprep.subr.mxu0 0.0
  %269 = vmatpush1.msra.mxu0 0.0
  %270 = vmatprep.subr.mxu0 0.0
  %271 = vmatpush1.msra.mxu0 0.0
  %272 = vmatprep.subr.mxu0 0.0
  %273 = vmatpush1.msra.mxu0 0.0
  %274 = vmatprep.subr.mxu0 0.0
  %275 = vmatpush1.msra.mxu0 0.0
  %276 = vmatprep.subr.mxu0 0.0
  %277 = vmatpush1.msra.mxu0 %v41
  %278 = vmatprep.subr.mxu0 0.0
  %279 = vmatpush1.msra.mxu0 %v38
  %280 = vmatprep.subr.mxu0 0.0
  %281 = vmatpush1.msra.mxu0 %v35
  %282 = vmatprep.subr.mxu0 0.0
  %283 = vmatpush1.msra.mxu0 %v32
  %284 = vmatprep.subr.mxu0 0.0
  %285 = vmatpush2.msra.mxu0 0.0
  %286 = vmatprep.subr.mxu0 0.0
  %287 = vmatpush2.msra.mxu0 0.0
  %288 = vmatprep.subr.mxu0 0.0
  %289 = vmatpush2.msra.mxu0 0.0
  %290 = vmatprep.subr.mxu0 0.0
  %291 = vmatpush2.msra.mxu0 0.0
  %292 = vmatprep.subr.mxu0 0.0
  %293 = vmatpush2.msra.mxu0 0.0
  %294 = vmatprep.subr.mxu0 0.0
  %295 = vmatpush2.msra.mxu0 0.0
  %296 = vmatprep.subr.mxu0 0.0
  %297 = vmatpush2.msra.mxu0 0.0
  %298 = vmatprep.subr.mxu0 0.0
  %299 = vmatpush2.msra.mxu0 0.0
  %300 = vmatprep.subr.mxu0 0.0
  %301 = vmatpush2.msra.mxu0 0.0
  %302 = vmatprep.subr.mxu0 0.0
  %303 = vmatpush2.msra.mxu0 0.0
  %304 = vmatprep.subr.mxu0 0.0
  %305 = vmatpush2.msra.mxu0 0.0
  %306 = vmatprep.subr.mxu0 0.0
  %307 = vmatpush2.msra.mxu0 0.0
  %308 = vmatprep.subr.mxu0 0.0
  %309 = vmatpush2.msra.mxu0 0.0
  %310 = vmatprep.subr.mxu0 0.0
  %311 = vmatpush2.msra.mxu0 0.0
  %312 = vmatprep.subr.mxu0 0.0
  %313 = vmatpush2.msra.mxu0 0.0
  %314 = vmatprep.subr.mxu0 0.0
  %315 = vmatpush2.msra.mxu0 0.0
  %316 = vmatprep.mubr.f32.mxu0 0.0
  %317 = vmatmul.mubr.f32.gmra.mxu0 %v44
  %v318 = vpop.f32.mrf.mxu0
  %v319 = vadd.f32 0.0, %v318
  %v320 = vpop.f32.mrf.mxu0
  %321 = vmatprep.mubr.f32.mxu0 0.0
  %322 = vmatmul.mubr.f32.gmra.mxu0 %v47
  %v323 = vpop.f32.mrf.mxu0
  %v324 = vadd.f32 0.0, %v323
  %v325 = vpop.f32.mrf.mxu0
  %326 = vmatprep.mubr.f32.mxu0 0.0
  %327 = vmatmul.mubr.f32.gmra.mxu0 %v50
  %v328 = vpop.f32.mrf.mxu0
  %v329 = vadd.f32 0.0, %v328
  %v330 = vpop.f32.mrf.mxu0
  %331 = vmatprep.mubr.f32.mxu0 0.0
  %332 = vmatmul.mubr.f32.gmra.mxu0 %v53
  %v333 = vpop.f32.mrf.mxu0
  %v334 = vadd.f32 0.0, %v333
  %v335 = vpop.f32.mrf.mxu0
  %336 = vmatprep.mubr.f32.mxu0 0.0
  %337 = vmatmul.mubr.f32.gmra.mxu0 %v56
  %v338 = vpop.f32.mrf.mxu0
  %v339 = vadd.f32 0.0, %v338
  %v340 = vpop.f32.mrf.mxu0
  %341 = vmatprep.mubr.f32.mxu0 0.0
  %342 = vmatmul.mubr.f32.gmra.mxu0 %v59
  %v343 = vpop.f32.mrf.mxu0
  %v344 = vadd.f32 0.0, %v343
  %v345 = vpop.f32.mrf.mxu0
  %346 = vmatprep.mubr.f32.mxu0 0.0
  %347 = vmatmul.mubr.f32.gmra.mxu0 %v62
  %v348 = vpop.f32.mrf.mxu0
  %v349 = vadd.f32 0.0, %v348
  %v350 = vpop.f32.mrf.mxu0
  %351 = vmatprep.mubr.f32.mxu0 0.0
  %352 = vmatmul.mubr.f32.gmra.mxu0 %v65
  %v353 = vpop.f32.mrf.mxu0
  %v354 = vadd.f32 0.0, %v353
  %v355 = vpop.f32.mrf.mxu0
  %356 = vmatprep.mubr.f32.mxu0 0.0
  %357 = vmatmul.mubr.f32.gmra.mxu0 %v68
  %v358 = vpop.f32.mrf.mxu0
  %v359 = vadd.f32 0.0, %v358
  %v360 = vpop.f32.mrf.mxu0
  %361 = vmatprep.mubr.f32.mxu0 0.0
  %362 = vmatmul.mubr.f32.gmra.mxu0 %v71
  %v363 = vpop.f32.mrf.mxu0
  %v364 = vadd.f32 0.0, %v363
  %v365 = vpop.f32.mrf.mxu0
  %366 = vmatprep.mubr.f32.mxu0 0.0
  %367 = vmatmul.mubr.f32.gmra.mxu0 %v74
  %v368 = vpop.f32.mrf.mxu0
  %v369 = vadd.f32 0.0, %v368
  %v370 = vpop.f32.mrf.mxu0
  %371 = vmatprep.mubr.f32.mxu0 0.0
  %372 = vmatmul.mubr.f32.gmra.mxu0 %v77
  %v373 = vpop.f32.mrf.mxu0
  %v374 = vadd.f32 0.0, %v373
  %v375 = vpop.f32.mrf.mxu0
  %376 = vmatprep.mubr.f32.mxu0 0.0
  %377 = vmatmul.mubr.f32.gmra.mxu0 %v80
  %v378 = vpop.f32.mrf.mxu0
  %v379 = vadd.f32 0.0, %v378
  %v380 = vpop.f32.mrf.mxu0
  %381 = vmatprep.mubr.f32.mxu0 0.0
  %382 = vmatmul.mubr.f32.gmra.mxu0 %v83
  %v383 = vpop.f32.mrf.mxu0
  %v384 = vadd.f32 0.0, %v383
  %v385 = vpop.f32.mrf.mxu0
  %386 = vmatprep.mubr.f32.mxu0 0.0
  %387 = vmatmul.mubr.f32.gmra.mxu0 %v86
  %v388 = vpop.f32.mrf.mxu0
  %v389 = vadd.f32 0.0, %v388
  %v390 = vpop.f32.mrf.mxu0
  %391 = vmatprep.mubr.f32.mxu0 0.0
  %392 = vmatmul.mubr.f32.gmra.mxu0 %v89
  %v393 = vpop.f32.mrf.mxu0
  %v394 = vadd.f32 0.0, %v393
  %v395 = vpop.f32.mrf.mxu0
  %396 = vdwg.mxu0
  %397 = vst [vmem:[%s3] sm:$0xff] %v158
  %398 = vst [vmem:[%s3 + $0x8] sm:$0xff] %v164
  %399 = vst [vmem:[%s3 + $0x10] sm:$0xff] %v170
  %400 = vst [vmem:[%s3 + $0x18] sm:$0xff] %v176
  %401 = vst [vmem:[%s3 + $0x20] sm:$0xff] %v182
  %402 = vst [vmem:[%s3 + $0x28] sm:$0xff] %v188
  %403 = vst [vmem:[%s3 + $0x30] sm:$0xff] %v194
  %404 = vst [vmem:[%s3 + $0x38] sm:$0xff] %v200
  %405 = vst [vmem:[%s3 + $0x40] sm:$0xff] %v206
  %406 = vst [vmem:[%s3 + $0x48] sm:$0xff] %v212
  %407 = vst [vmem:[%s3 + $0x50] sm:$0xff] %v218
  %408 = vst [vmem:[%s3 + $0x58] sm:$0xff] %v224
  %409 = vst [vmem:[%s3 + $0x60] sm:$0xff] %v230
  %410 = vst [vmem:[%s3 + $0x68] sm:$0xff] %v236
  %411 = vst [vmem:[%s3 + $0x70] sm:$0xff] %v242
  %412 = vst [vmem:[%s3 + $0x78] sm:$0xff] %v248
  %v413 = vmax.f32 %v160, 0.0
  %v414 = vmax.f32 %v166, 0.0
  %v415 = vmax.f32 %v172, 0.0
  %v416 = vmax.f32 %v178, 0.0
  %v417 = vmax.f32 %v184, 0.0
  %v418 = vmax.f32 %v190, 0.0
  %v419 = vmax.f32 %v196, 0.0
  %v420 = vmax.f32 %v202, 0.0
  %v421 = vmax.f32 %v208, 0.0
  %v422 = vmax.f32 %v214, 0.0
  %v423 = vmax.f32 %v220, 0.0
  %v424 = vmax.f32 %v226, 0.0
  %v425 = vmax.f32 %v232, 0.0
  %v426 = vmax.f32 %v238, 0.0
  %v427 = vmax.f32 %v244, 0.0
  %v428 = vmax.f32 %v250, 0.0
  %v429 = vand.u32 2147483647, %v160
  %v430 = vand.u32 2147483647, %v166
  %v431 = vand.u32 2147483647, %v172
  %v432 = vand.u32 2147483647, %v178
  %v433 = vand.u32 2147483647, %v184
  %v434 = vand.u32 2147483647, %v190
  %v435 = vand.u32 2147483647, %v196
  %v436 = vand.u32 2147483647, %v202
  %v437 = vand.u32 2147483647, %v208
  %v438 = vand.u32 2147483647, %v214
  %v439 = vand.u32 2147483647, %v220
  %v440 = vand.u32 2147483647, %v226
  %v441 = vand.u32 2147483647, %v232
  %v442 = vand.u32 2147483647, %v238
  %v443 = vand.u32 2147483647, %v244
  %v444 = vand.u32 2147483647, %v250
  %v445 = vsub.f32 0.0, %v429
  %v446 = vsub.f32 0.0, %v430
  %v447 = vsub.f32 0.0, %v431
  %v448 = vsub.f32 0.0, %v432
  %v449 = vsub.f32 0.0, %v433
  %v450 = vsub.f32 0.0, %v434
  %v451 = vsub.f32 0.0, %v435
  %v452 = vsub.f32 0.0, %v436
  %v453 = vsub.f32 0.0, %v437
  %v454 = vsub.f32 0.0, %v438
  %v455 = vsub.f32 0.0, %v439
  %v456 = vsub.f32 0.0, %v440
  %v457 = vsub.f32 0.0, %v441
  %v458 = vsub.f32 0.0, %v442
  %v459 = vsub.f32 0.0, %v443
  %v460 = vsub.f32 0.0, %v444
  %v461 = vmul.f32 %v445, 1.442695
  %v462 = vpow.pop %v461
  %v463 = vmul.f32 %v446, 1.442695
  %v464 = vpow.pop %v463
  %v465 = vmul.f32 %v447, 1.442695
  %v466 = vpow.pop %v465
  %v467 = vmul.f32 %v448, 1.442695
  %v468 = vpow.pop %v467
  %v469 = vmul.f32 %v449, 1.442695
  %v470 = vpow.pop %v469
  %v471 = vmul.f32 %v450, 1.442695
  %v472 = vpow.pop %v471
  %v473 = vmul.f32 %v451, 1.442695
  %v474 = vpow.pop %v473
  %v475 = vmul.f32 %v452, 1.442695
  %v476 = vpow.pop %v475
  %v477 = vmul.f32 %v453, 1.442695
  %v478 = vpow.pop %v477
  %v479 = vmul.f32 %v454, 1.442695
  %v480 = vpow.pop %v479
  %v481 = vmul.f32 %v455, 1.442695
  %v482 = vpow.pop %v481
  %v483 = vmul.f32 %v456, 1.442695
  %v484 = vpow.pop %v483
  %v485 = vmul.f32 %v457, 1.442695
  %v486 = vpow.pop %v485
  %v487 = vmul.f32 %v458, 1.442695
  %v488 = vpow.pop %v487
  %v489 = vmul.f32 %v459, 1.442695
  %v490 = vpow.pop %v489
  %v491 = vmul.f32 %v460, 1.442695
  %v492 = vpow.pop %v491
  %v493 = vadd.f32 %v462, 1.0
  %v494 = vlog2.pop %v493
  %v495 = vmul.f32 %v494, 0.6931472
  %v496 = vmul.f32 -0.5, %v462
  %v497 = vadd.f32 %v496, 1.0
  %v498 = vmul.f32 %v497, %v462
  %v499 = vand.u32 2147483647, %v462
  %vm500 = vcmp.lt.f32.partialorder %v499, 0.0004427343
  %v501 = vsel %vm500, %v498, %v495
  %v502 = vadd.f32 %v464, 1.0
  %v503 = vlog2.pop %v502
  %v504 = vmul.f32 %v503, 0.6931472
  %v505 = vmul.f32 -0.5, %v464
  %v506 = vadd.f32 %v505, 1.0
  %v507 = vmul.f32 %v506, %v464
  %v508 = vand.u32 2147483647, %v464
  %vm509 = vcmp.lt.f32.partialorder %v508, 0.0004427343
  %v510 = vsel %vm509, %v507, %v504
  %v511 = vadd.f32 %v466, 1.0
  %v512 = vlog2.pop %v511
  %v513 = vmul.f32 %v512, 0.6931472
  %v514 = vmul.f32 -0.5, %v466
  %v515 = vadd.f32 %v514, 1.0
  %v516 = vmul.f32 %v515, %v466
  %v517 = vand.u32 2147483647, %v466
  %vm518 = vcmp.lt.f32.partialorder %v517, 0.0004427343
  %v519 = vsel %vm518, %v516, %v513
  %v520 = vadd.f32 %v468, 1.0
  %v521 = vlog2.pop %v520
  %v522 = vmul.f32 %v521, 0.6931472
  %v523 = vmul.f32 -0.5, %v468
  %v524 = vadd.f32 %v523, 1.0
  %v525 = vmul.f32 %v524, %v468
  %v526 = vand.u32 2147483647, %v468
  %vm527 = vcmp.lt.f32.partialorder %v526, 0.0004427343
  %v528 = vsel %vm527, %v525, %v522
  %v529 = vadd.f32 %v470, 1.0
  %v530 = vlog2.pop %v529
  %v531 = vmul.f32 %v530, 0.6931472
  %v532 = vmul.f32 -0.5, %v470
  %v533 = vadd.f32 %v532, 1.0
  %v534 = vmul.f32 %v533, %v470
  %v535 = vand.u32 2147483647, %v470
  %vm536 = vcmp.lt.f32.partialorder %v535, 0.0004427343
  %v537 = vsel %vm536, %v534, %v531
  %v538 = vadd.f32 %v472, 1.0
  %v539 = vlog2.pop %v538
  %v540 = vmul.f32 %v539, 0.6931472
  %v541 = vmul.f32 -0.5, %v472
  %v542 = vadd.f32 %v541, 1.0
  %v543 = vmul.f32 %v542, %v472
  %v544 = vand.u32 2147483647, %v472
  %vm545 = vcmp.lt.f32.partialorder %v544, 0.0004427343
  %v546 = vsel %vm545, %v543, %v540
  %v547 = vadd.f32 %v474, 1.0
  %v548 = vlog2.pop %v547
  %v549 = vmul.f32 %v548, 0.6931472
  %v550 = vmul.f32 -0.5, %v474
  %v551 = vadd.f32 %v550, 1.0
  %v552 = vmul.f32 %v551, %v474
  %v553 = vand.u32 2147483647, %v474
  %vm554 = vcmp.lt.f32.partialorder %v553, 0.0004427343
  %v555 = vsel %vm554, %v552, %v549
  %v556 = vadd.f32 %v476, 1.0
  %v557 = vlog2.pop %v556
  %v558 = vmul.f32 %v557, 0.6931472
  %v559 = vmul.f32 -0.5, %v476
  %v560 = vadd.f32 %v559, 1.0
  %v561 = vmul.f32 %v560, %v476
  %v562 = vand.u32 2147483647, %v476
  %vm563 = vcmp.lt.f32.partialorder %v562, 0.0004427343
  %v564 = vsel %vm563, %v561, %v558
  %v565 = vadd.f32 %v478, 1.0
  %v566 = vlog2.pop %v565
  %v567 = vmul.f32 %v566, 0.6931472
  %v568 = vmul.f32 -0.5, %v478
  %v569 = vadd.f32 %v568, 1.0
  %v570 = vmul.f32 %v569, %v478
  %v571 = vand.u32 2147483647, %v478
  %vm572 = vcmp.lt.f32.partialorder %v571, 0.0004427343
  %v573 = vsel %vm572, %v570, %v567
  %v574 = vadd.f32 %v480, 1.0
  %v575 = vlog2.pop %v574
  %v576 = vmul.f32 %v575, 0.6931472
  %v577 = vmul.f32 -0.5, %v480
  %v578 = vadd.f32 %v577, 1.0
  %v579 = vmul.f32 %v578, %v480
  %v580 = vand.u32 2147483647, %v480
  %vm581 = vcmp.lt.f32.partialorder %v580, 0.0004427343
  %v582 = vsel %vm581, %v579, %v576
  %v583 = vadd.f32 %v482, 1.0
  %v584 = vlog2.pop %v583
  %v585 = vmul.f32 %v584, 0.6931472
  %v586 = vmul.f32 -0.5, %v482
  %v587 = vadd.f32 %v586, 1.0
  %v588 = vmul.f32 %v587, %v482
  %v589 = vand.u32 2147483647, %v482
  %vm590 = vcmp.lt.f32.partialorder %v589, 0.0004427343
  %v591 = vsel %vm590, %v588, %v585
  %v592 = vadd.f32 %v484, 1.0
  %v593 = vlog2.pop %v592
  %v594 = vmul.f32 %v593, 0.6931472
  %v595 = vmul.f32 -0.5, %v484
  %v596 = vadd.f32 %v595, 1.0
  %v597 = vmul.f32 %v596, %v484
  %v598 = vand.u32 2147483647, %v484
  %vm599 = vcmp.lt.f32.partialorder %v598, 0.0004427343
  %v600 = vsel %vm599, %v597, %v594
  %v601 = vadd.f32 %v486, 1.0
  %v602 = vlog2.pop %v601
  %v603 = vmul.f32 %v602, 0.6931472
  %v604 = vmul.f32 -0.5, %v486
  %v605 = vadd.f32 %v604, 1.0
  %v606 = vmul.f32 %v605, %v486
  %v607 = vand.u32 2147483647, %v486
  %vm608 = vcmp.lt.f32.partialorder %v607, 0.0004427343
  %v609 = vsel %vm608, %v606, %v603
  %v610 = vadd.f32 %v488, 1.0
  %v611 = vlog2.pop %v610
  %v612 = vmul.f32 %v611, 0.6931472
  %v613 = vmul.f32 -0.5, %v488
  %v614 = vadd.f32 %v613, 1.0
  %v615 = vmul.f32 %v614, %v488
  %v616 = vand.u32 2147483647, %v488
  %vm617 = vcmp.lt.f32.partialorder %v616, 0.0004427343
  %v618 = vsel %vm617, %v615, %v612
  %v619 = vadd.f32 %v490, 1.0
  %v620 = vlog2.pop %v619
  %v621 = vmul.f32 %v620, 0.6931472
  %v622 = vmul.f32 -0.5, %v490
  %v623 = vadd.f32 %v622, 1.0
  %v624 = vmul.f32 %v623, %v490
  %v625 = vand.u32 2147483647, %v490
  %vm626 = vcmp.lt.f32.partialorder %v625, 0.0004427343
  %v627 = vsel %vm626, %v624, %v621
  %v628 = vadd.f32 %v492, 1.0
  %v629 = vlog2.pop %v628
  %v630 = vmul.f32 %v629, 0.6931472
  %v631 = vmul.f32 -0.5, %v492
  %v632 = vadd.f32 %v631, 1.0
  %v633 = vmul.f32 %v632, %v492
  %v634 = vand.u32 2147483647, %v492
  %vm635 = vcmp.lt.f32.partialorder %v634, 0.0004427343
  %v636 = vsel %vm635, %v633, %v630
  %v637 = vadd.f32 %v413, %v501
  %v638 = vadd.f32 %v414, %v510
  %v639 = vadd.f32 %v415, %v519
  %v640 = vadd.f32 %v416, %v528
  %v641 = vadd.f32 %v417, %v537
  %v642 = vadd.f32 %v418, %v546
  %v643 = vadd.f32 %v419, %v555
  %v644 = vadd.f32 %v420, %v564
  %v645 = vadd.f32 %v421, %v573
  %v646 = vadd.f32 %v422, %v582
  %v647 = vadd.f32 %v423, %v591
  %v648 = vadd.f32 %v424, %v600
  %v649 = vadd.f32 %v425, %v609
  %v650 = vadd.f32 %v426, %v618
  %v651 = vadd.f32 %v427, %v627
  %v652 = vadd.f32 %v428, %v636
  %653 = vst [vmem:[%s4] sm:$0xff] %v637
  %654 = vst [vmem:[%s4 + $0x8] sm:$0xff] %v638
  %655 = vst [vmem:[%s4 + $0x10] sm:$0xff] %v639
  %656 = vst [vmem:[%s4 + $0x18] sm:$0xff] %v640
  %657 = vst [vmem:[%s4 + $0x20] sm:$0xff] %v641
  %658 = vst [vmem:[%s4 + $0x28] sm:$0xff] %v642
  %659 = vst [vmem:[%s4 + $0x30] sm:$0xff] %v643
  %660 = vst [vmem:[%s4 + $0x38] sm:$0xff] %v644
  %661 = vst [vmem:[%s4 + $0x40] sm:$0xff] %v645
  %662 = vst [vmem:[%s4 + $0x48] sm:$0xff] %v646
  %663 = vst [vmem:[%s4 + $0x50] sm:$0xff] %v647
  %664 = vst [vmem:[%s4 + $0x58] sm:$0xff] %v648
  %665 = vst [vmem:[%s4 + $0x60] sm:$0xff] %v649
  %666 = vst [vmem:[%s4 + $0x68] sm:$0xff] %v650
  %667 = vst [vmem:[%s4 + $0x70] sm:$0xff] %v651
  %668 = vst [vmem:[%s4 + $0x78] sm:$0xff] %v652
  %vm669 = vcmask 31744
  %v670 = vsel %vm669, %v319, -inf
  %671 = vmax.xlane.f32.xlu0 %v670
  %v672 = vpop.xlane.xlu0 %671
  %v673 = vsel %vm669, %v324, -inf
  %674 = vmax.xlane.f32.xlu0 %v673
  %v675 = vpop.xlane.xlu0 %674
  %v676 = vsel %vm669, %v329, -inf
  %677 = vmax.xlane.f32.xlu0 %v676
  %v678 = vpop.xlane.xlu0 %677
  %v679 = vsel %vm669, %v334, -inf
  %680 = vmax.xlane.f32.xlu0 %v679
  %v681 = vpop.xlane.xlu0 %680
  %v682 = vsel %vm669, %v339, -inf
  %683 = vmax.xlane.f32.xlu0 %v682
  %v684 = vpop.xlane.xlu0 %683
  %v685 = vsel %vm669, %v344, -inf
  %686 = vmax.xlane.f32.xlu0 %v685
  %v687 = vpop.xlane.xlu0 %686
  %v688 = vsel %vm669, %v349, -inf
  %689 = vmax.xlane.f32.xlu0 %v688
  %v690 = vpop.xlane.xlu0 %689
  %v691 = vsel %vm669, %v354, -inf
  %692 = vmax.xlane.f32.xlu0 %v691
  %v693 = vpop.xlane.xlu0 %692
  %v694 = vsel %vm669, %v359, -inf
  %695 = vmax.xlane.f32.xlu0 %v694
  %v696 = vpop.xlane.xlu0 %695
  %v697 = vsel %vm669, %v364, -inf
  %698 = vmax.xlane.f32.xlu0 %v697
  %v699 = vpop.xlane.xlu0 %698
  %v700 = vsel %vm669, %v369, -inf
  %701 = vmax.xlane.f32.xlu0 %v700
  %v702 = vpop.xlane.xlu0 %701
  %v703 = vsel %vm669, %v374, -inf
  %704 = vmax.xlane.f32.xlu0 %v703
  %v705 = vpop.xlane.xlu0 %704
  %v706 = vsel %vm669, %v379, -inf
  %707 = vmax.xlane.f32.xlu0 %v706
  %v708 = vpop.xlane.xlu0 %707
  %v709 = vsel %vm669, %v384, -inf
  %710 = vmax.xlane.f32.xlu0 %v709
  %v711 = vpop.xlane.xlu0 %710
  %v712 = vsel %vm669, %v389, -inf
  %713 = vmax.xlane.f32.xlu0 %v712
  %v714 = vpop.xlane.xlu0 %713
  %v715 = vsel %vm669, %v394, -inf
  %716 = vmax.xlane.f32.xlu0 %v715
  %v717 = vpop.xlane.xlu0 %716
  %v718 = vsub.f32 %v319, %v672
  %v719 = vsub.f32 %v324, %v675
  %v720 = vsub.f32 %v329, %v678
  %v721 = vsub.f32 %v334, %v681
  %v722 = vsub.f32 %v339, %v684
  %v723 = vsub.f32 %v344, %v687
  %v724 = vsub.f32 %v349, %v690
  %v725 = vsub.f32 %v354, %v693
  %v726 = vsub.f32 %v359, %v696
  %v727 = vsub.f32 %v364, %v699
  %v728 = vsub.f32 %v369, %v702
  %v729 = vsub.f32 %v374, %v705
  %v730 = vsub.f32 %v379, %v708
  %v731 = vsub.f32 %v384, %v711
  %v732 = vsub.f32 %v389, %v714
  %v733 = vsub.f32 %v394, %v717
  %v734 = vmul.f32 %v718, 1.442695
  %v735 = vpow.pop %v734
  %v736 = vmul.f32 %v719, 1.442695
  %v737 = vpow.pop %v736
  %v738 = vmul.f32 %v720, 1.442695
  %v739 = vpow.pop %v738
  %v740 = vmul.f32 %v721, 1.442695
  %v741 = vpow.pop %v740
  %v742 = vmul.f32 %v722, 1.442695
  %v743 = vpow.pop %v742
  %v744 = vmul.f32 %v723, 1.442695
  %v745 = vpow.pop %v744
  %v746 = vmul.f32 %v724, 1.442695
  %v747 = vpow.pop %v746
  %v748 = vmul.f32 %v725, 1.442695
  %v749 = vpow.pop %v748
  %v750 = vmul.f32 %v726, 1.442695
  %v751 = vpow.pop %v750
  %v752 = vmul.f32 %v727, 1.442695
  %v753 = vpow.pop %v752
  %v754 = vmul.f32 %v728, 1.442695
  %v755 = vpow.pop %v754
  %v756 = vmul.f32 %v729, 1.442695
  %v757 = vpow.pop %v756
  %v758 = vmul.f32 %v730, 1.442695
  %v759 = vpow.pop %v758
  %v760 = vmul.f32 %v731, 1.442695
  %v761 = vpow.pop %v760
  %v762 = vmul.f32 %v732, 1.442695
  %v763 = vpow.pop %v762
  %v764 = vmul.f32 %v733, 1.442695
  %v765 = vpow.pop %v764
  %v766 = vsel %vm669, %v735, 0.0
  %767 = vadd.xlane.f32.xlu0 %v766
  %v768 = vpop.xlane.xlu0 %767
  %v769 = vsel %vm669, %v737, 0.0
  %770 = vadd.xlane.f32.xlu0 %v769
  %v771 = vpop.xlane.xlu0 %770
  %v772 = vsel %vm669, %v739, 0.0
  %773 = vadd.xlane.f32.xlu0 %v772
  %v774 = vpop.xlane.xlu0 %773
  %v775 = vsel %vm669, %v741, 0.0
  %776 = vadd.xlane.f32.xlu0 %v775
  %v777 = vpop.xlane.xlu0 %776
  %v778 = vsel %vm669, %v743, 0.0
  %779 = vadd.xlane.f32.xlu0 %v778
  %v780 = vpop.xlane.xlu0 %779
  %v781 = vsel %vm669, %v745, 0.0
  %782 = vadd.xlane.f32.xlu0 %v781
  %v783 = vpop.xlane.xlu0 %782
  %v784 = vsel %vm669, %v747, 0.0
  %785 = vadd.xlane.f32.xlu0 %v784
  %v786 = vpop.xlane.xlu0 %785
  %v787 = vsel %vm669, %v749, 0.0
  %788 = vadd.xlane.f32.xlu0 %v787
  %v789 = vpop.xlane.xlu0 %788
  %v790 = vsel %vm669, %v751, 0.0
  %791 = vadd.xlane.f32.xlu0 %v790
  %v792 = vpop.xlane.xlu0 %791
  %v793 = vsel %vm669, %v753, 0.0
  %794 = vadd.xlane.f32.xlu0 %v793
  %v795 = vpop.xlane.xlu0 %794
  %v796 = vsel %vm669, %v755, 0.0
  %797 = vadd.xlane.f32.xlu0 %v796
  %v798 = vpop.xlane.xlu0 %797
  %v799 = vsel %vm669, %v757, 0.0
  %800 = vadd.xlane.f32.xlu0 %v799
  %v801 = vpop.xlane.xlu0 %800
  %v802 = vsel %vm669, %v759, 0.0
  %803 = vadd.xlane.f32.xlu0 %v802
  %v804 = vpop.xlane.xlu0 %803
  %v805 = vsel %vm669, %v761, 0.0
  %806 = vadd.xlane.f32.xlu0 %v805
  %v807 = vpop.xlane.xlu0 %806
  %v808 = vsel %vm669, %v763, 0.0
  %809 = vadd.xlane.f32.xlu0 %v808
  %v810 = vpop.xlane.xlu0 %809
  %v811 = vsel %vm669, %v765, 0.0
  %812 = vadd.xlane.f32.xlu0 %v811
  %v813 = vpop.xlane.xlu0 %812
  %v814 = vrcp.pop %v768
  %v815 = vrcp.pop %v771
  %v816 = vrcp.pop %v774
  %v817 = vrcp.pop %v777
  %v818 = vrcp.pop %v780
  %v819 = vrcp.pop %v783
  %v820 = vrcp.pop %v786
  %v821 = vrcp.pop %v789
  %v822 = vrcp.pop %v792
  %v823 = vrcp.pop %v795
  %v824 = vrcp.pop %v798
  %v825 = vrcp.pop %v801
  %v826 = vrcp.pop %v804
  %v827 = vrcp.pop %v807
  %v828 = vrcp.pop %v810
  %v829 = vrcp.pop %v813
  %v830 = vmul.f32 %v735, %v814
  %v831 = vmul.f32 %v737, %v815
  %v832 = vmul.f32 %v739, %v816
  %v833 = vmul.f32 %v741, %v817
  %v834 = vmul.f32 %v743, %v818
  %v835 = vmul.f32 %v745, %v819
  %v836 = vmul.f32 %v747, %v820
  %v837 = vmul.f32 %v749, %v821
  %v838 = vmul.f32 %v751, %v822
  %v839 = vmul.f32 %v753, %v823
  %v840 = vmul.f32 %v755, %v824
  %v841 = vmul.f32 %v757, %v825
  %v842 = vmul.f32 %v759, %v826
  %v843 = vmul.f32 %v761, %v827
  %v844 = vmul.f32 %v763, %v828
  %v845 = vmul.f32 %v765, %v829
  %846 = vst.msk [vmem:[%s2] sm:$0xff] %vm669, %v830
  %847 = vst.msk [vmem:[%s2 + $0x8] sm:$0xff] %vm669, %v831
  %848 = vst.msk [vmem:[%s2 + $0x10] sm:$0xff] %vm669, %v832
  %849 = vst.msk [vmem:[%s2 + $0x18] sm:$0xff] %vm669, %v833
  %850 = vst.msk [vmem:[%s2 + $0x20] sm:$0xff] %vm669, %v834
  %851 = vst.msk [vmem:[%s2 + $0x28] sm:$0xff] %vm669, %v835
  %852 = vst.msk [vmem:[%s2 + $0x30] sm:$0xff] %vm669, %v836
  %853 = vst.msk [vmem:[%s2 + $0x38] sm:$0xff] %vm669, %v837
  %854 = vst.msk [vmem:[%s2 + $0x40] sm:$0xff] %vm669, %v838
  %855 = vst.msk [vmem:[%s2 + $0x48] sm:$0xff] %vm669, %v839
  %856 = vst.msk [vmem:[%s2 + $0x50] sm:$0xff] %vm669, %v840
  %857 = vst.msk [vmem:[%s2 + $0x58] sm:$0xff] %vm669, %v841
  %858 = vst.msk [vmem:[%s2 + $0x60] sm:$0xff] %vm669, %v842
  %859 = vst.msk [vmem:[%s2 + $0x68] sm:$0xff] %vm669, %v843
  %860 = vst.msk [vmem:[%s2 + $0x70] sm:$0xff] %vm669, %v844
  %861 = vst.msk [vmem:[%s2 + $0x78] sm:$0xff] %vm669, %v845
  // Predicated region
  $region10: #{gmdn_forward.1} parent=0 // pred_check
    _
  $region11: #{gmdn_forward.1} parent=0 // pred_check_branch
    %863 = sbr.rel (0) target = $region13
  $region12: #{gmdn_forward.1} parent=0 // pred_region
    _
  $region13: #{gmdn_forward.1} parent=0 // pred_fallthru
    _
  // Predicated region
  $region14: #{gmdn_forward.1} parent=0 // pred_check
    _
  $region15: #{gmdn_forward.1} parent=0 // pred_check_branch
    %865 = sbr.rel (0) target = $region17
  $region16: #{gmdn_forward.1} parent=0 // pred_region
    _
  $region17: #{gmdn_forward.1} parent=0 // pred_fallthru
    _
  // Predicated region
  $region18: #{gmdn_forward.1} parent=0 // pred_check
    _
  $region19: #{gmdn_forward.1} parent=0 // pred_check_branch
    %867 = sbr.rel (0) target = $region21
  $region20: #{gmdn_forward.1} parent=0 // pred_region
    _
  $region21: #{gmdn_forward.1} parent=0 // pred_fallthru
    _
  // Predicated region
  $region22: #{gmdn_forward.1} parent=0 // pred_check
    _
  $region23: #{gmdn_forward.1} parent=0 // pred_check_branch
    %869 = sbr.rel (0) target = $region25
  $region24: #{gmdn_forward.1} parent=0 // pred_region
    _
  $region25: #{gmdn_forward.1} parent=0 // pred_fallthru
    _
  // Predicated region
  $region26: #{gmdn_forward.1} parent=0 // pred_check
    _
  $region27: #{gmdn_forward.1} parent=0 // pred_check_branch
    %871 = sbr.rel (0) target = $region29
  $region28: #{gmdn_forward.1} parent=0 // pred_region
    _
  $region29: #{gmdn_forward.1} parent=0 // pred_fallthru
    _
  // Predicated region
  $region30: #{gmdn_forward.1} parent=0 // pred_check
    _
  $region31: #{gmdn_forward.1} parent=0 // pred_check_branch
    %873 = sbr.rel (0) target = $region33
  $region32: #{gmdn_forward.1} parent=0 // pred_region
    _
  $region33: #{gmdn_forward.1} parent=0 // pred_fallthru
    _

</llo_original>
